<compile_context>
chip_gen: v7x
topology: tpu7x:2x2x1
jax: 0.10.0
libtpu: 0.0.40
codegen_flags: <defaults>
</compile_context>

<pallas_src>
import jax
import jax.numpy as jnp
from jax import lax
from jax.experimental import pallas as pl
from jax.experimental.pallas import tpu as pltpu


def _linear_bias_relu_kernel(x_ref, w_ref, b_ref, o_ref):
    # x_ref : (TB, K)  f32, VMEM
    # w_ref : (K, N)   f32, VMEM  (K-major, pre-laid once at init)
    # b_ref : (1, N)   f32, VMEM
    # o_ref : (TB, N)  f32, VMEM
    TB, K = x_ref.shape
    N = w_ref.shape[1]
    x = x_ref[...]
    w = w_ref[...]
    b = b_ref[...].astype(jnp.float32)

    if TB <= 8:
        # VPU path for tiny batches: 288 MACs do not justify an MXU round-trip.
        acc = jnp.broadcast_to(b, (TB, N))
        for k in range(K):  # K=12, fully unrolled multiply-adds on the VALU
            acc = acc + x[:, k:k + 1] * w[k:k + 1, :]
        y = acc
    else:
        # MXU path for batched calls: contract K (dim 1 of x, dim 0 of w).
        y = lax.dot_general(
            x, w,
            dimension_numbers=(((1,), (0,)), ((), ())),
            preferred_element_type=jnp.float32,
        )
        y = y + b

    o_ref[...] = jnp.maximum(y, 0.0).astype(o_ref.dtype)


def model_forward(x, weight_kn, bias, *, batch_tile=256):
    """x: (B, K) f32; weight_kn: (K, N) f32 (pre-transposed, K-major); bias: (1, N) f32."""
    B, K = x.shape
    K2, N = weight_kn.shape
    assert K == K2, "weight must be pre-laid out as (in_features, out_features)"
    assert bias.shape == (1, N)

    flops = 2 * B * K * N
    bytes_accessed = 4 * (B * K + K * N + N + B * N)
    cost = pl.CostEstimate(flops=flops, transcendentals=0,
                           bytes_accessed=bytes_accessed)

    if B > batch_tile and B % batch_tile == 0:
        # Batched path: 1-D "parallel" batch grid, weight/bias stay VMEM-resident.
        TB = batch_tile
        return pl.pallas_call(
            _linear_bias_relu_kernel,
            out_shape=jax.ShapeDtypeStruct((B, N), jnp.float32),
            grid=(B // TB,),
            in_specs=[
                pl.BlockSpec((TB, K), lambda i: (i, 0)),
                pl.BlockSpec((K, N), lambda i: (0, 0)),
                pl.BlockSpec((1, N), lambda i: (0, 0)),
            ],
            out_specs=pl.BlockSpec((TB, N), lambda i: (i, 0)),
            compiler_params=pltpu.CompilerParams(
                dimension_semantics=("parallel",)),
            cost_estimate=cost,
        )(x, weight_kn, bias)

    # Gridless path (spec case B=1): whole problem resident in VMEM, single
    # kernel invocation, no pipeline prologue / per-step bookkeeping.
    return pl.pallas_call(
        _linear_bias_relu_kernel,
        out_shape=jax.ShapeDtypeStruct((B, N), jnp.float32),
        in_specs=[
            pl.BlockSpec(memory_space=pltpu.MemorySpace.VMEM),
            pl.BlockSpec(memory_space=pltpu.MemorySpace.VMEM),
            pl.BlockSpec(memory_space=pltpu.MemorySpace.VMEM),
        ],
        out_specs=pl.BlockSpec(memory_space=pltpu.MemorySpace.VMEM),
        cost_estimate=cost,
    )(x, weight_kn, bias)


if __name__ == "__main__":
    key = jax.random.PRNGKey(0)
    k_x, k_w, k_xb, k_b = jax.random.split(key, 4)

    # Parameters, initialized as torch would:
    #  - Linear(12, 24, bias=False).weight shape (24, 12), uniform ±1/sqrt(12)
    #  - self.bias explicitly zeros((1, 24))
    bound = 1.0 / jnp.sqrt(12.0)
    weight = jax.random.uniform(
        k_w, (24, 12), dtype=jnp.float32, minval=-bound, maxval=bound)
    bias = jnp.zeros((1, 24), dtype=jnp.float32)

    # One-time parameter re-layout to K-major (init-time, not per forward).
    weight_kn = jnp.asarray(weight.T)  # (12, 24)

    run = jax.jit(model_forward, static_argnames=("batch_tile",))

    # --- Spec case: x1 = randn(1, 12), zero bias (VPU tiny-batch path) ---
    x1 = jax.random.normal(k_x, (1, 12), dtype=jnp.float32)
    out = jax.block_until_ready(run(x1, weight_kn, bias))
    ref = jnp.maximum(x1 @ weight.T + bias, 0.0)
    assert out.shape == (1, 24)
    assert jnp.allclose(out, ref, atol=1e-5, rtol=1e-5)

    # --- Batched case with non-zero bias: exercises the grid/MXU path and
    #     the (1,24)->(B,24) bias broadcast (per review's correctness note) ---
    xb = jax.random.normal(k_xb, (512, 12), dtype=jnp.float32)
    bias_nz = 0.1 * jax.random.normal(k_b, (1, 24), dtype=jnp.float32)
    out_b = jax.block_until_ready(run(xb, weight_kn, bias_nz))
    ref_b = jnp.maximum(xb @ weight.T + bias_nz, 0.0)
    assert out_b.shape == (512, 24)
    assert jnp.allclose(out_b, ref_b, atol=1e-4, rtol=1e-4)

    print("KERNEL_OK")
</pallas_src>

<mosaic_0001>
module attributes {stable_mosaic.version = 11 : i64} {
  func.func @_linear_bias_relu_kernel(%arg0: memref<1x12xf32, #tpu.memory_space<vmem>>, %arg1: memref<12x24xf32, #tpu.memory_space<vmem>>, %arg2: memref<1x24xf32, #tpu.memory_space<vmem>>, %arg3: memref<1x24xf32, #tpu.memory_space<vmem>>) attributes {dimension_semantics = [], scalar_prefetch = 0 : i64, scratch_operands = 0 : i64, tpu.core_type = #tpu.core_type<tc>} {
    %c0 = arith.constant 0 : index
    %c0_0 = arith.constant 0 : index
    %0 = vector.load %arg0[%c0, %c0_0] : memref<1x12xf32, #tpu.memory_space<vmem>>, vector<1x12xf32>
    %c0_1 = arith.constant 0 : index
    %c0_2 = arith.constant 0 : index
    %1 = vector.load %arg1[%c0_1, %c0_2] : memref<12x24xf32, #tpu.memory_space<vmem>>, vector<12x24xf32>
    %c0_3 = arith.constant 0 : index
    %c0_4 = arith.constant 0 : index
    %2 = vector.load %arg2[%c0_3, %c0_4] : memref<1x24xf32, #tpu.memory_space<vmem>>, vector<1x24xf32>
    %3 = vector.extract_strided_slice %0 {offsets = [0, 0], sizes = [1, 1], strides = [1, 1]} : vector<1x12xf32> to vector<1x1xf32>
    %4 = vector.extract_strided_slice %1 {offsets = [0, 0], sizes = [1, 24], strides = [1, 1]} : vector<12x24xf32> to vector<1x24xf32>
    %5 = vector.broadcast %3 : vector<1x1xf32> to vector<1x24xf32>
    %6 = arith.mulf %5, %4 : vector<1x24xf32>
    %7 = arith.addf %2, %6 : vector<1x24xf32>
    %8 = vector.extract_strided_slice %0 {offsets = [0, 1], sizes = [1, 1], strides = [1, 1]} : vector<1x12xf32> to vector<1x1xf32>
    %9 = vector.extract_strided_slice %1 {offsets = [1, 0], sizes = [1, 24], strides = [1, 1]} : vector<12x24xf32> to vector<1x24xf32>
    %10 = vector.broadcast %8 : vector<1x1xf32> to vector<1x24xf32>
    %11 = arith.mulf %10, %9 : vector<1x24xf32>
    %12 = arith.addf %7, %11 : vector<1x24xf32>
    %13 = vector.extract_strided_slice %0 {offsets = [0, 2], sizes = [1, 1], strides = [1, 1]} : vector<1x12xf32> to vector<1x1xf32>
    %14 = vector.extract_strided_slice %1 {offsets = [2, 0], sizes = [1, 24], strides = [1, 1]} : vector<12x24xf32> to vector<1x24xf32>
    %15 = vector.broadcast %13 : vector<1x1xf32> to vector<1x24xf32>
    %16 = arith.mulf %15, %14 : vector<1x24xf32>
    %17 = arith.addf %12, %16 : vector<1x24xf32>
    %18 = vector.extract_strided_slice %0 {offsets = [0, 3], sizes = [1, 1], strides = [1, 1]} : vector<1x12xf32> to vector<1x1xf32>
    %19 = vector.extract_strided_slice %1 {offsets = [3, 0], sizes = [1, 24], strides = [1, 1]} : vector<12x24xf32> to vector<1x24xf32>
    %20 = vector.broadcast %18 : vector<1x1xf32> to vector<1x24xf32>
    %21 = arith.mulf %20, %19 : vector<1x24xf32>
    %22 = arith.addf %17, %21 : vector<1x24xf32>
    %23 = vector.extract_strided_slice %0 {offsets = [0, 4], sizes = [1, 1], strides = [1, 1]} : vector<1x12xf32> to vector<1x1xf32>
    %24 = vector.extract_strided_slice %1 {offsets = [4, 0], sizes = [1, 24], strides = [1, 1]} : vector<12x24xf32> to vector<1x24xf32>
    %25 = vector.broadcast %23 : vector<1x1xf32> to vector<1x24xf32>
    %26 = arith.mulf %25, %24 : vector<1x24xf32>
    %27 = arith.addf %22, %26 : vector<1x24xf32>
    %28 = vector.extract_strided_slice %0 {offsets = [0, 5], sizes = [1, 1], strides = [1, 1]} : vector<1x12xf32> to vector<1x1xf32>
    %29 = vector.extract_strided_slice %1 {offsets = [5, 0], sizes = [1, 24], strides = [1, 1]} : vector<12x24xf32> to vector<1x24xf32>
    %30 = vector.broadcast %28 : vector<1x1xf32> to vector<1x24xf32>
    %31 = arith.mulf %30, %29 : vector<1x24xf32>
    %32 = arith.addf %27, %31 : vector<1x24xf32>
    %33 = vector.extract_strided_slice %0 {offsets = [0, 6], sizes = [1, 1], strides = [1, 1]} : vector<1x12xf32> to vector<1x1xf32>
    %34 = vector.extract_strided_slice %1 {offsets = [6, 0], sizes = [1, 24], strides = [1, 1]} : vector<12x24xf32> to vector<1x24xf32>
    %35 = vector.broadcast %33 : vector<1x1xf32> to vector<1x24xf32>
    %36 = arith.mulf %35, %34 : vector<1x24xf32>
    %37 = arith.addf %32, %36 : vector<1x24xf32>
    %38 = vector.extract_strided_slice %0 {offsets = [0, 7], sizes = [1, 1], strides = [1, 1]} : vector<1x12xf32> to vector<1x1xf32>
    %39 = vector.extract_strided_slice %1 {offsets = [7, 0], sizes = [1, 24], strides = [1, 1]} : vector<12x24xf32> to vector<1x24xf32>
    %40 = vector.broadcast %38 : vector<1x1xf32> to vector<1x24xf32>
    %41 = arith.mulf %40, %39 : vector<1x24xf32>
    %42 = arith.addf %37, %41 : vector<1x24xf32>
    %43 = vector.extract_strided_slice %0 {offsets = [0, 8], sizes = [1, 1], strides = [1, 1]} : vector<1x12xf32> to vector<1x1xf32>
    %44 = vector.extract_strided_slice %1 {offsets = [8, 0], sizes = [1, 24], strides = [1, 1]} : vector<12x24xf32> to vector<1x24xf32>
    %45 = vector.broadcast %43 : vector<1x1xf32> to vector<1x24xf32>
    %46 = arith.mulf %45, %44 : vector<1x24xf32>
    %47 = arith.addf %42, %46 : vector<1x24xf32>
    %48 = vector.extract_strided_slice %0 {offsets = [0, 9], sizes = [1, 1], strides = [1, 1]} : vector<1x12xf32> to vector<1x1xf32>
    %49 = vector.extract_strided_slice %1 {offsets = [9, 0], sizes = [1, 24], strides = [1, 1]} : vector<12x24xf32> to vector<1x24xf32>
    %50 = vector.broadcast %48 : vector<1x1xf32> to vector<1x24xf32>
    %51 = arith.mulf %50, %49 : vector<1x24xf32>
    %52 = arith.addf %47, %51 : vector<1x24xf32>
    %53 = vector.extract_strided_slice %0 {offsets = [0, 10], sizes = [1, 1], strides = [1, 1]} : vector<1x12xf32> to vector<1x1xf32>
    %54 = vector.extract_strided_slice %1 {offsets = [10, 0], sizes = [1, 24], strides = [1, 1]} : vector<12x24xf32> to vector<1x24xf32>
    %55 = vector.broadcast %53 : vector<1x1xf32> to vector<1x24xf32>
    %56 = arith.mulf %55, %54 : vector<1x24xf32>
    %57 = arith.addf %52, %56 : vector<1x24xf32>
    %58 = vector.extract_strided_slice %0 {offsets = [0, 11], sizes = [1, 1], strides = [1, 1]} : vector<1x12xf32> to vector<1x1xf32>
    %59 = vector.extract_strided_slice %1 {offsets = [11, 0], sizes = [1, 24], strides = [1, 1]} : vector<12x24xf32> to vector<1x24xf32>
    %60 = vector.broadcast %58 : vector<1x1xf32> to vector<1x24xf32>
    %61 = arith.mulf %60, %59 : vector<1x24xf32>
    %62 = arith.addf %57, %61 : vector<1x24xf32>
    %cst = arith.constant 0.000000e+00 : f32
    %63 = vector.broadcast %cst : f32 to vector<1x24xf32>
    %64 = arith.maximumf %62, %63 : vector<1x24xf32>
    %c0_5 = arith.constant 0 : index
    %c0_6 = arith.constant 0 : index
    %65 = vector.load %arg3[%c0_5, %c0_6] : memref<1x24xf32, #tpu.memory_space<vmem>>, vector<1x24xf32>
    tpu.vector_store %arg3[%c0_5, %c0_6], %64 {strides = array<i32>} : memref<1x24xf32, #tpu.memory_space<vmem>>, vector<1x24xf32>,
    return
  }
}

</mosaic_0001>

<llo_original>
// kernel: model_forward.1
$region0: #{model_forward.1}
  #allocation0 [shape = 'u32[]', space=smem, size = 0x4, offset = 0x4, fixed_abs, tag = 'smem constant byte address 0x4 - core index']
  #allocation1 [shape = 'u32[144,128]{1,0:T(1,128)}', space=vmem, size = 0x12000, scoped, tag = 'internal scratch']
  %s0 = inlined_call_operand.hbm [shape: f32[1,12], index: 0, kind: input, shape index: {}]
  %s1 = inlined_call_operand.hbm [shape: f32[12,24], index: 1, kind: input, shape index: {}]
  %s2 = inlined_call_operand.vmem [shape: f32[1,24], index: 2, kind: input, shape index: {}]
  %s3 = inlined_call_operand.hbm [shape: f32[1,24], index: 3, kind: output, shape index: {}]
  %s4 = sld [smem:[#allocation0]]
  $region30: #{model_forward.1} parent=0
    _
  %s6 = ssub.s32 1, %s4
  %s7 = scalar_select 0, %s6, %s4
  $region1: #{model_forward.1} parent=0
    #allocation2 [shape = 'u8[512]{0}', space=vmem, size = 0x400, scoped, tag = 'input window, operand 0, single buffered']
    #allocation3 [shape = 's32[1]{0}', space=sflag, size = 0x4, scoped, tag = 'scoped memory for model_forward.1']
    #allocation4 [shape = 's32[1]{0}', space=sflag, size = 0x4, scoped, tag = 'scoped memory for model_forward.1']
    #allocation5 [shape = 'u8[8192]{0}', space=vmem, size = 0x2000, scoped, tag = 'input window, operand 1, single buffered']
    #allocation6 [shape = 's32[1]{0}', space=sflag, size = 0x4, scoped, tag = 'scoped memory for model_forward.1']
    #allocation7 [shape = 'u8[512]{0}', space=vmem, size = 0x400, scoped, tag = 'output window, operand 0, single buffered']
    %8 = vsyncpa [#allocation3], 0
    %9 = vsyncpa [#allocation6], 0
    %10 = vsyncpa [#allocation4], 0
    // Predicated region
    $region2: #{model_forward.1} parent=1 // pred_check
      _
    $region3: #{model_forward.1} parent=1 // pred_check_branch
      %12 = sbr.rel (0) target = $region5
    $region4: #{model_forward.1} parent=1 // pred_region
      %s14 = ssub.s32 16, 16
      %15 = vsyncadd [#allocation3], %s14
      %s17 = sshll.u32 [#allocation2], 4
      %s18 = int_to_ptr.vmem [resolvable:$true] %s17
      %20 = dma.hbm_to_vmem [thread:$0]  %s0, 16, %s18, [#allocation3]
    $region5: #{model_forward.1} parent=1 // pred_fallthru
      _
    // Predicated region
    $region6: #{model_forward.1} parent=1 // pred_check
      _
    $region7: #{model_forward.1} parent=1 // pred_check_branch
      %22 = sbr.rel (0) target = $region9
    $region8: #{model_forward.1} parent=1 // pred_region
      %s24 = ssub.s32 256, 256
      %25 = vsyncadd [#allocation6], %s24
      %s26 = sshll.u32 [#allocation5], 4
      %s27 = int_to_ptr.vmem [resolvable:$true] %s26
      %32 = dma.hbm_to_vmem [thread:$0]  %s1, 256, %s27, [#allocation6], 128, 128, 8
    $region9: #{model_forward.1} parent=1 // pred_fallthru
      _
    // Predicated region
    $region10: #{model_forward.1} parent=1 // pred_check
      _
    $region11: #{model_forward.1} parent=1 // pred_check_branch
      %34 = sbr.rel (0) target = $region13
    $region12: #{model_forward.1} parent=1 // pred_region
      _
    $region13: #{model_forward.1} parent=1 // pred_fallthru
      _
    // Predicated region
    $region14: #{model_forward.1} parent=1 // pred_check
      _
    $region15: #{model_forward.1} parent=1 // pred_check_branch
      %36 = sbr.rel (0) target = $region17
    $region16: #{model_forward.1} parent=1 // pred_region
      %37 = dma.done [#allocation3], 16
    $region17: #{model_forward.1} parent=1 // pred_fallthru
      _
    // Predicated region
    $region18: #{model_forward.1} parent=1 // pred_check
      _
    $region19: #{model_forward.1} parent=1 // pred_check_branch
      %39 = sbr.rel (0) target = $region21
    $region20: #{model_forward.1} parent=1 // pred_region
      %40 = dma.done [#allocation6], 256
    $region21: #{model_forward.1} parent=1 // pred_fallthru
      _
    %v41 = vld [vmem:[#allocation2] sm:$0x1]
    %v42 = vld [vmem:[#allocation5] sm:$0xff]
    %v43 = vld [vmem:[#allocation5 + $0x8] sm:$0xf]
    %v44 = vld [vmem:[%s2] sm:$0x1]
    %46 = vset.pattern.permute.xlu0 0
    %47 = vperm.xlu0 %46, %v41
    %v48 = vpop.permute.xlu0 %47
    %v50 = vlaneseq
    %v51 = vshrl.u32 %v50, 7
    %v52 = vsub.s32 0, %v51
    %v53 = vrot.slane %v48, %v52
    %v54 = vmul.f32 %v53, %v42
    %v55 = vadd.f32 %v44, %v54
    %56 = vset.pattern.permute.xlu0 1
    %57 = vperm.xlu0 %56, %v41
    %v58 = vpop.permute.xlu0 %57
    %v60 = vlaneseq
    %v61 = vshrl.u32 %v60, 7
    %v62 = vsub.s32 0, %v61
    %v63 = vrot.slane %v58, %v62
    %v64 = vmul.f32 %v63, %v42
    %v67 = vunpack.c.l.s4 1966171168
    %v68 = vunpack.c.0.s8 %v67
    %v69 = vlaneseq
    %v70 = vshrl.u32 %v69, 7
    %v71 = vsub.s32 %v68, %v70
    %v72 = vrot.slane %v64, %v71
    %v73 = vcombine.high %v72, %v72
    %v75 = vunpack.c.l.s4 1966171168
    %v76 = vunpack.c.0.s8 %v75
    %v77 = vlaneseq
    %v78 = vshrl.u32 %v77, 7
    %v79 = vsub.s32 %v76, %v78
    %v80 = vrot.slane %v73, %v79
    %v82 = vadd.f32 %v55, %v80
    %83 = vset.pattern.permute.xlu0 2
    %84 = vperm.xlu0 %83, %v41
    %v85 = vpop.permute.xlu0 %84
    %v87 = vlaneseq
    %v88 = vshrl.u32 %v87, 7
    %v89 = vsub.s32 0, %v88
    %v90 = vrot.slane %v85, %v89
    %v91 = vmul.f32 %v90, %v42
    %v94 = vunpack.c.l.s4 1966171168
    %v95 = vunpack.c.0.s8 %v94
    %v96 = vlaneseq
    %v97 = vshrl.u32 %v96, 7
    %v98 = vsub.s32 %v95, %v97
    %v99 = vrot.slane %v91, %v98
    %v101 = vunpack.c.l.s4 1966171168
    %v102 = vunpack.c.0.s8 %v101
    %v103 = vlaneseq
    %v104 = vshrl.u32 %v103, 7
    %v105 = vsub.s32 %v102, %v104
    %v106 = vrot.slane %v99, %v105
    %v107 = vcombine.high %v106, %v106
    %v109 = vadd.f32 %v82, %v107
    %110 = vset.pattern.permute.xlu0 3
    %111 = vperm.xlu0 %110, %v41
    %v112 = vpop.permute.xlu0 %111
    %v114 = vlaneseq
    %v115 = vshrl.u32 %v114, 7
    %v116 = vsub.s32 0, %v115
    %v117 = vrot.slane %v112, %v116
    %v118 = vmul.f32 %v117, %v42
    %v121 = vunpack.c.l.s4 1966171168
    %v122 = vunpack.c.0.s8 %v121
    %v123 = vlaneseq
    %v124 = vshrl.u32 %v123, 7
    %v125 = vsub.s32 %v122, %v124
    %v126 = vrot.slane %v118, %v125
    %v127 = vcombine.high %v126, %v126
    %v129 = vunpack.c.l.s4 1966171168
    %v130 = vunpack.c.0.s8 %v129
    %v131 = vlaneseq
    %v132 = vshrl.u32 %v131, 7
    %v133 = vsub.s32 %v130, %v132
    %v134 = vrot.slane %v127, %v133
    %v135 = vcombine.high %v134, %v134
    %v137 = vadd.f32 %v109, %v135
    %138 = vset.pattern.permute.xlu0 4
    %139 = vperm.xlu0 %138, %v41
    %v140 = vpop.permute.xlu0 %139
    %v142 = vlaneseq
    %v143 = vshrl.u32 %v142, 7
    %v144 = vsub.s32 0, %v143
    %v145 = vrot.slane %v140, %v144
    %v146 = vmul.f32 %v145, %v42
    %v148 = vcombine.high %v146, %v146
    %v150 = vunpack.c.l.s4 1966171168
    %v151 = vunpack.c.0.s8 %v150
    %v152 = vlaneseq
    %v153 = vshrl.u32 %v152, 7
    %v154 = vsub.s32 %v151, %v153
    %v155 = vrot.slane %v148, %v154
    %v157 = vunpack.c.l.s4 1966171168
    %v158 = vunpack.c.0.s8 %v157
    %v159 = vlaneseq
    %v160 = vshrl.u32 %v159, 7
    %v161 = vsub.s32 %v158, %v160
    %v162 = vrot.slane %v155, %v161
    %v164 = vadd.f32 %v137, %v162
    %165 = vset.pattern.permute.xlu0 5
    %166 = vperm.xlu0 %165, %v41
    %v167 = vpop.permute.xlu0 %166
    %v169 = vlaneseq
    %v170 = vshrl.u32 %v169, 7
    %v171 = vsub.s32 0, %v170
    %v172 = vrot.slane %v167, %v171
    %v173 = vmul.f32 %v172, %v42
    %v175 = vcombine.high %v173, %v173
    %v177 = vunpack.c.l.s4 1966171168
    %v178 = vunpack.c.0.s8 %v177
    %v179 = vlaneseq
    %v180 = vshrl.u32 %v179, 7
    %v181 = vsub.s32 %v178, %v180
    %v182 = vrot.slane %v175, %v181
    %v183 = vcombine.high %v182, %v182
    %v185 = vunpack.c.l.s4 1966171168
    %v186 = vunpack.c.0.s8 %v185
    %v187 = vlaneseq
    %v188 = vshrl.u32 %v187, 7
    %v189 = vsub.s32 %v186, %v188
    %v190 = vrot.slane %v183, %v189
    %v192 = vadd.f32 %v164, %v190
    %193 = vset.pattern.permute.xlu0 6
    %194 = vperm.xlu0 %193, %v41
    %v195 = vpop.permute.xlu0 %194
    %v197 = vlaneseq
    %v198 = vshrl.u32 %v197, 7
    %v199 = vsub.s32 0, %v198
    %v200 = vrot.slane %v195, %v199
    %v201 = vmul.f32 %v200, %v42
    %v203 = vcombine.high %v201, %v201
    %v205 = vunpack.c.l.s4 1966171168
    %v206 = vunpack.c.0.s8 %v205
    %v207 = vlaneseq
    %v208 = vshrl.u32 %v207, 7
    %v209 = vsub.s32 %v206, %v208
    %v210 = vrot.slane %v203, %v209
    %v212 = vunpack.c.l.s4 1966171168
    %v213 = vunpack.c.0.s8 %v212
    %v214 = vlaneseq
    %v215 = vshrl.u32 %v214, 7
    %v216 = vsub.s32 %v213, %v215
    %v217 = vrot.slane %v210, %v216
    %v218 = vcombine.high %v217, %v217
    %v220 = vadd.f32 %v192, %v218
    %221 = vset.pattern.permute.xlu0 7
    %222 = vperm.xlu0 %221, %v41
    %v223 = vpop.permute.xlu0 %222
    %v225 = vlaneseq
    %v226 = vshrl.u32 %v225, 7
    %v227 = vsub.s32 0, %v226
    %v228 = vrot.slane %v223, %v227
    %v229 = vmul.f32 %v228, %v42
    %v231 = vcombine.high %v229, %v229
    %v233 = vunpack.c.l.s4 1966171168
    %v234 = vunpack.c.0.s8 %v233
    %v235 = vlaneseq
    %v236 = vshrl.u32 %v235, 7
    %v237 = vsub.s32 %v234, %v236
    %v238 = vrot.slane %v231, %v237
    %v239 = vcombine.high %v238, %v238
    %v241 = vunpack.c.l.s4 1966171168
    %v242 = vunpack.c.0.s8 %v241
    %v243 = vlaneseq
    %v244 = vshrl.u32 %v243, 7
    %v245 = vsub.s32 %v242, %v244
    %v246 = vrot.slane %v239, %v245
    %v247 = vcombine.high %v246, %v246
    %v249 = vadd.f32 %v220, %v247
    %250 = vset.pattern.permute.xlu0 8
    %251 = vperm.xlu0 %250, %v41
    %v252 = vpop.permute.xlu0 %251
    %v254 = vlaneseq
    %v255 = vshrl.u32 %v254, 7
    %v256 = vsub.s32 0, %v255
    %v257 = vrot.slane %v252, %v256
    %v258 = vmul.f32 %v257, %v43
    %v259 = vadd.f32 %v249, %v258
    %260 = vset.pattern.permute.xlu0 9
    %261 = vperm.xlu0 %260, %v41
    %v262 = vpop.permute.xlu0 %261
    %v264 = vlaneseq
    %v265 = vshrl.u32 %v264, 7
    %v266 = vsub.s32 0, %v265
    %v267 = vrot.slane %v262, %v266
    %v268 = vmul.f32 %v267, %v43
    %v271 = vunpack.c.l.s4 1966171168
    %v272 = vunpack.c.0.s8 %v271
    %v273 = vlaneseq
    %v274 = vshrl.u32 %v273, 7
    %v275 = vsub.s32 %v272, %v274
    %v276 = vrot.slane %v268, %v275
    %v277 = vcombine.high %v276, %v276
    %v279 = vunpack.c.l.s4 1966171168
    %v280 = vunpack.c.0.s8 %v279
    %v281 = vlaneseq
    %v282 = vshrl.u32 %v281, 7
    %v283 = vsub.s32 %v280, %v282
    %v284 = vrot.slane %v277, %v283
    %v286 = vadd.f32 %v259, %v284
    %287 = vset.pattern.permute.xlu0 10
    %288 = vperm.xlu0 %287, %v41
    %v289 = vpop.permute.xlu0 %288
    %v291 = vlaneseq
    %v292 = vshrl.u32 %v291, 7
    %v293 = vsub.s32 0, %v292
    %v294 = vrot.slane %v289, %v293
    %v295 = vmul.f32 %v294, %v43
    %v298 = vunpack.c.l.s4 1966171168
    %v299 = vunpack.c.0.s8 %v298
    %v300 = vlaneseq
    %v301 = vshrl.u32 %v300, 7
    %v302 = vsub.s32 %v299, %v301
    %v303 = vrot.slane %v295, %v302
    %v305 = vunpack.c.l.s4 1966171168
    %v306 = vunpack.c.0.s8 %v305
    %v307 = vlaneseq
    %v308 = vshrl.u32 %v307, 7
    %v309 = vsub.s32 %v306, %v308
    %v310 = vrot.slane %v303, %v309
    %v311 = vcombine.high %v310, %v310
    %v313 = vadd.f32 %v286, %v311
    %314 = vset.pattern.permute.xlu0 11
    %315 = vperm.xlu0 %314, %v41
    %v316 = vpop.permute.xlu0 %315
    %v318 = vlaneseq
    %v319 = vshrl.u32 %v318, 7
    %v320 = vsub.s32 0, %v319
    %v321 = vrot.slane %v316, %v320
    %v322 = vmul.f32 %v321, %v43
    %v325 = vunpack.c.l.s4 1966171168
    %v326 = vunpack.c.0.s8 %v325
    %v327 = vlaneseq
    %v328 = vshrl.u32 %v327, 7
    %v329 = vsub.s32 %v326, %v328
    %v330 = vrot.slane %v322, %v329
    %v331 = vcombine.high %v330, %v330
    %v333 = vunpack.c.l.s4 1966171168
    %v334 = vunpack.c.0.s8 %v333
    %v335 = vlaneseq
    %v336 = vshrl.u32 %v335, 7
    %v337 = vsub.s32 %v334, %v336
    %v338 = vrot.slane %v331, %v337
    %v339 = vcombine.high %v338, %v338
    %v341 = vadd.f32 %v313, %v339
    %v342 = vmax.f32 %v341, 0.0
    %vm343 = vcmask 188416
    %344 = vst.msk [vmem:[#allocation7] sm:$0x1] %vm343, %v342
    // Predicated region
    $region22: #{model_forward.1} parent=1 // pred_check
      _
    $region23: #{model_forward.1} parent=1 // pred_check_branch
      %346 = sbr.rel (0) target = $region25
    $region24: #{model_forward.1} parent=1 // pred_region
      %s348 = ssub.s32 16, 16
      %349 = vsyncadd [#allocation4], %s348
      %s351 = sshll.u32 [#allocation7], 4
      %s352 = int_to_ptr.vmem [resolvable:$true] %s351
      %354 = dma.vmem_to_hbm [thread:$0]  %s352, 16, %s3, [#allocation4]
    $region25: #{model_forward.1} parent=1 // pred_fallthru
      _
    // Predicated region
    $region26: #{model_forward.1} parent=1 // pred_check
      _
    $region27: #{model_forward.1} parent=1 // pred_check_branch
      %356 = sbr.rel (0) target = $region29
    $region28: #{model_forward.1} parent=1 // pred_region
      %357 = dma.done [#allocation4], 16
    $region29: #{model_forward.1} parent=1 // pred_fallthru
      _
    %358 = vsyncpa [#allocation3], 1
    %359 = vsyncpa [#allocation6], 1
    %360 = vsyncpa [#allocation4], 1

</llo_original>
